<compile_context>
chip_gen: v6e
topology: v6e:2x2x1
jax: 0.10.0
libtpu: 0.0.40
codegen_flags: <defaults>
</compile_context>

<pallas_src>
import functools

import jax
import jax.numpy as jnp
from jax.experimental import pallas as pl
from jax.experimental.pallas import tpu as pltpu

_LANE = 128
_SUBLANE = 8
_TILE_B_MAX = 1024
_REPARAM_NOISE = 1e-6


def _round_up(x, m):
    return ((x + m - 1) // m) * m


def _pad_to(x, shape):
    pads = [(0, t - s) for s, t in zip(x.shape, shape)]
    if all(p == (0, 0) for p in pads):
        return x
    return jnp.pad(x, pads)


def _choose_batch_tiling(B):
    """Pick (tile_b, b_pad, grid_b). Prefer >=2 even grid steps so v7x megacore
    splits the batch; use up to 1024-row tiles to amortize per-step overhead."""
    b8 = _round_up(B, _SUBLANE)
    if b8 > _TILE_B_MAX:
        tile_b = _TILE_B_MAX
    elif B > _SUBLANE:
        tile_b = _round_up(B, 2 * _SUBLANE) // 2   # two even tiles
    else:
        tile_b = b8                                 # tiny batch: single tile
    b_pad = _round_up(B, tile_b)
    return tile_b, b_pad, b_pad // tile_b


def _actor_kernel(n_actions, x_ref, w1_ref, b1_ref, w2_ref, b2_ref,
                  wh_ref, bh_ref, out_ref):
    # fc1 + relu (MXU accumulates f32; epilogue stays f32 on all generations)
    h1 = jnp.dot(x_ref[...], w1_ref[...], preferred_element_type=jnp.float32)
    h1 = jnp.maximum(h1 + b1_ref[...], 0.0)
    # fc2 + relu
    h2 = jnp.dot(h1.astype(w2_ref.dtype), w2_ref[...],
                 preferred_element_type=jnp.float32)
    h2 = jnp.maximum(h2 + b2_ref[...], 0.0)
    # fused mu/sigma heads: output is exactly 2*n_actions lanes wide
    heads = jnp.dot(h2.astype(wh_ref.dtype), wh_ref[...],
                    preferred_element_type=jnp.float32) + bh_ref[...]
    # clamp only the sigma lanes: columns [n_actions, 2*n_actions)
    lane = jax.lax.broadcasted_iota(jnp.int32, heads.shape, dimension=1)
    clamped = jnp.clip(heads, _REPARAM_NOISE, 1.0)
    out_ref[...] = jnp.where(lane >= n_actions, clamped, heads).astype(out_ref.dtype)


@functools.partial(jax.jit, static_argnames=("compute_dtype",))
def actor_network_forward(state, w1, b1, w2, b2, w_mu, b_mu, w_sigma, b_sigma,
                          compute_dtype=jnp.float32):
    """state: [B, input_dims] f32 -> (mu: [B, n_actions], sigma: [B, n_actions]).

    compute_dtype=jnp.bfloat16 halves the dominant state/weight DMA bytes (valid on
    v5e/v6e/v7x); keep the default f32 for exact parity with the PyTorch module."""
    B, input_dims = state.shape
    fc1_dims = w1.shape[1]
    fc2_dims = w2.shape[1]
    n_actions = w_mu.shape[1]
    n_heads = 2 * n_actions

    # Hidden dims padded to lane width (weights are resident -> negligible cost).
    f1_p = _round_up(fc1_dims, _LANE)
    f2_p = _round_up(fc2_dims, _LANE)

    tile_b, b_pad, grid_b = _choose_batch_tiling(B)

    # State keeps its real (tiny) feature width; only the batch axis may pad.
    x_p = _pad_to(state.astype(jnp.float32), (b_pad, input_dims)).astype(compute_dtype)
    w1_p = _pad_to(w1, (input_dims, f1_p)).astype(compute_dtype)
    b1_p = _pad_to(b1, (1, f1_p))                                   # f32 epilogue
    w2_p = _pad_to(w2, (f1_p, f2_p)).astype(compute_dtype)
    b2_p = _pad_to(b2, (1, f2_p))                                   # f32 epilogue
    # Fuse mu and sigma heads into one matmul; no lane padding of the output.
    wh_p = _pad_to(jnp.concatenate([w_mu, w_sigma], axis=1),
                   (f2_p, n_heads)).astype(compute_dtype)
    bh_p = jnp.concatenate([b_mu, b_sigma], axis=1)                 # (1, n_heads) f32

    def resident(arr):
        # Whole-array block with constant index_map: DMA'd once, stays in VMEM
        # across every batch tile.
        zeros = (0,) * arr.ndim
        return pl.BlockSpec(arr.shape, lambda i, z=zeros: z)

    out = pl.pallas_call(
        functools.partial(_actor_kernel, n_actions),
        out_shape=jax.ShapeDtypeStruct((b_pad, n_heads), jnp.float32),
        grid_spec=pl.GridSpec(
            grid=(grid_b,),
            in_specs=[
                # Block last dim == full array dim -> exempt from the 128 rule.
                pl.BlockSpec((tile_b, input_dims), lambda i: (i, 0)),
                resident(w1_p), resident(b1_p),
                resident(w2_p), resident(b2_p),
                resident(wh_p), resident(bh_p),
            ],
            out_specs=pl.BlockSpec((tile_b, n_heads), lambda i: (i, 0)),
        ),
        compiler_params=pltpu.CompilerParams(
            dimension_semantics=("parallel",),
        ),
    )(x_p, w1_p, b1_p, w2_p, b2_p, wh_p, bh_p)

    mu = out[:B, :n_actions]
    sigma = out[:B, n_actions:]
    return mu, sigma


def init_actor_network_params(key, input_dims, fc1_dims, fc2_dims, n_actions):
    """Mirror nn.Linear defaults: U(-1/sqrt(fan_in), 1/sqrt(fan_in)).

    Weights are stored as [in, out] (transposed vs. PyTorch's [out, in])."""
    ks = jax.random.split(key, 8)

    def linear(kw, kb, fan_in, fan_out):
        bound = 1.0 / jnp.sqrt(jnp.float32(fan_in))
        w = jax.random.uniform(kw, (fan_in, fan_out), jnp.float32, -bound, bound)
        b = jax.random.uniform(kb, (1, fan_out), jnp.float32, -bound, bound)
        return w, b

    w1, b1 = linear(ks[0], ks[1], input_dims, fc1_dims)
    w2, b2 = linear(ks[2], ks[3], fc1_dims, fc2_dims)
    w_mu, b_mu = linear(ks[4], ks[5], fc2_dims, n_actions)
    w_sigma, b_sigma = linear(ks[6], ks[7], fc2_dims, n_actions)
    return w1, b1, w2, b2, w_mu, b_mu, w_sigma, b_sigma


if __name__ == "__main__":
    key = jax.random.PRNGKey(0)
    k_params, k_state = jax.random.split(key)

    # Small shapes consistent with ActorNetwork(input_dims=(8,), fc1=32, fc2=32, n_actions=2)
    batch, input_dims, fc1_dims, fc2_dims, n_actions = 8, 8, 32, 32, 2

    params = init_actor_network_params(k_params, input_dims, fc1_dims, fc2_dims, n_actions)
    state = jax.random.normal(k_state, (batch, input_dims), jnp.float32)

    # f32 path: exact parity with the PyTorch forward math.
    mu, sigma = actor_network_forward(state, *params)
    jax.block_until_ready((mu, sigma))

    # Pure-JAX reference of the same forward math.
    w1, b1, w2, b2, w_mu, b_mu, w_sigma, b_sigma = params
    h1 = jnp.maximum(state @ w1 + b1, 0.0)
    h2 = jnp.maximum(h1 @ w2 + b2, 0.0)
    mu_ref = h2 @ w_mu + b_mu
    sigma_ref = jnp.clip(h2 @ w_sigma + b_sigma, _REPARAM_NOISE, 1.0)

    assert mu.shape == (batch, n_actions) and sigma.shape == (batch, n_actions)
    assert jnp.allclose(mu, mu_ref, atol=1e-5, rtol=1e-5)
    assert jnp.allclose(sigma, sigma_ref, atol=1e-5, rtol=1e-5)

    # bf16 compute path (perf option suggested for v5e/v6e/v7x): loose parity only.
    mu_bf, sigma_bf = actor_network_forward(state, *params, compute_dtype=jnp.bfloat16)
    jax.block_until_ready((mu_bf, sigma_bf))
    assert mu_bf.shape == (batch, n_actions) and sigma_bf.shape == (batch, n_actions)
    assert jnp.allclose(mu_bf, mu_ref, atol=1e-1, rtol=1e-1)
    assert jnp.allclose(sigma_bf, sigma_ref, atol=1e-1, rtol=1e-1)

    # TODO(synk): sample_normal (Normal sampling, tanh squash, log_prob, max_action
    # scaling) is a training-time op outside forward(); not implemented in-kernel.

    print("KERNEL_OK")
</pallas_src>

<mosaic_0001>
module attributes {stable_mosaic.version = 11 : i64} {
  func.func @_actor_kernel(%arg0: i32, %arg1: memref<8x8xf32, #tpu.memory_space<vmem>>, %arg2: memref<8x128xf32, #tpu.memory_space<vmem>>, %arg3: memref<1x128xf32, #tpu.memory_space<vmem>>, %arg4: memref<128x128xf32, #tpu.memory_space<vmem>>, %arg5: memref<1x128xf32, #tpu.memory_space<vmem>>, %arg6: memref<128x4xf32, #tpu.memory_space<vmem>>, %arg7: memref<1x4xf32, #tpu.memory_space<vmem>>, %arg8: memref<8x4xf32, #tpu.memory_space<vmem>>) attributes {dimension_semantics = [#tpu.dimension_semantics<parallel>], iteration_bounds = array<i64: 1>, scalar_prefetch = 0 : i64, scratch_operands = 0 : i64, tpu.core_type = #tpu.core_type<tc>, window_params = [{transform_indices = @transform_0, window_bounds = array<i64: 8, 8>}, {pipeline_mode = #tpu.pipeline_mode<synchronous>, transform_indices = @transform_1, window_bounds = array<i64: 8, 128>}, {pipeline_mode = #tpu.pipeline_mode<synchronous>, transform_indices = @transform_2, window_bounds = array<i64: 1, 128>}, {pipeline_mode = #tpu.pipeline_mode<synchronous>, transform_indices = @transform_3, window_bounds = array<i64: 128, 128>}, {pipeline_mode = #tpu.pipeline_mode<synchronous>, transform_indices = @transform_4, window_bounds = array<i64: 1, 128>}, {pipeline_mode = #tpu.pipeline_mode<synchronous>, transform_indices = @transform_5, window_bounds = array<i64: 128, 4>}, {pipeline_mode = #tpu.pipeline_mode<synchronous>, transform_indices = @transform_6, window_bounds = array<i64: 1, 4>}, {transform_indices = @transform_7, window_bounds = array<i64: 8, 4>}]} {
    %c0 = arith.constant 0 : index
    %c0_0 = arith.constant 0 : index
    %0 = vector.load %arg1[%c0, %c0_0] : memref<8x8xf32, #tpu.memory_space<vmem>>, vector<8x8xf32>
    %c0_1 = arith.constant 0 : index
    %c0_2 = arith.constant 0 : index
    %1 = vector.load %arg2[%c0_1, %c0_2] : memref<8x128xf32, #tpu.memory_space<vmem>>, vector<8x128xf32>
    %cst = arith.constant dense<0.000000e+00> : vector<8x128xf32>
    %2 = tpu.matmul %0, %1, %cst {dimension_numbers = #tpu.dot_dimension_numbers<[1], [0], [0], [1], [0, 0, 1, 1], [], []>} : vector<8x8xf32>, vector<8x128xf32>, vector<8x128xf32> -> vector<8x128xf32>
    %c0_3 = arith.constant 0 : index
    %c0_4 = arith.constant 0 : index
    %3 = vector.load %arg3[%c0_3, %c0_4] : memref<1x128xf32, #tpu.memory_space<vmem>>, vector<1x128xf32>
    %4 = vector.broadcast %3 : vector<1x128xf32> to vector<8x128xf32>
    %5 = arith.addf %2, %4 : vector<8x128xf32>
    %cst_5 = arith.constant 0.000000e+00 : f32
    %6 = vector.broadcast %cst_5 : f32 to vector<8x128xf32>
    %7 = arith.maximumf %5, %6 : vector<8x128xf32>
    %c0_6 = arith.constant 0 : index
    %c0_7 = arith.constant 0 : index
    %8 = vector.load %arg4[%c0_6, %c0_7] : memref<128x128xf32, #tpu.memory_space<vmem>>, vector<128x128xf32>
    %cst_8 = arith.constant dense<0.000000e+00> : vector<8x128xf32>
    %9 = tpu.matmul %7, %8, %cst_8 {dimension_numbers = #tpu.dot_dimension_numbers<[1], [0], [0], [1], [0, 0, 1, 1], [], []>} : vector<8x128xf32>, vector<128x128xf32>, vector<8x128xf32> -> vector<8x128xf32>
    %c0_9 = arith.constant 0 : index
    %c0_10 = arith.constant 0 : index
    %10 = vector.load %arg5[%c0_9, %c0_10] : memref<1x128xf32, #tpu.memory_space<vmem>>, vector<1x128xf32>
    %11 = vector.broadcast %10 : vector<1x128xf32> to vector<8x128xf32>
    %12 = arith.addf %9, %11 : vector<8x128xf32>
    %cst_11 = arith.constant 0.000000e+00 : f32
    %13 = vector.broadcast %cst_11 : f32 to vector<8x128xf32>
    %14 = arith.maximumf %12, %13 : vector<8x128xf32>
    %c0_12 = arith.constant 0 : index
    %c0_13 = arith.constant 0 : index
    %15 = vector.load %arg6[%c0_12, %c0_13] : memref<128x4xf32, #tpu.memory_space<vmem>>, vector<128x4xf32>
    %cst_14 = arith.constant dense<0.000000e+00> : vector<8x4xf32>
    %16 = tpu.matmul %14, %15, %cst_14 {dimension_numbers = #tpu.dot_dimension_numbers<[1], [0], [0], [1], [0, 0, 1, 1], [], []>} : vector<8x128xf32>, vector<128x4xf32>, vector<8x4xf32> -> vector<8x4xf32>
    %c0_15 = arith.constant 0 : index
    %c0_16 = arith.constant 0 : index
    %17 = vector.load %arg7[%c0_15, %c0_16] : memref<1x4xf32, #tpu.memory_space<vmem>>, vector<1x4xf32>
    %18 = vector.broadcast %17 : vector<1x4xf32> to vector<8x4xf32>
    %19 = arith.addf %16, %18 : vector<8x4xf32>
    %20 = tpu.iota {dimensions = array<i32: 1>} : vector<8x4xi32>
    %cst_17 = arith.constant 9.99999997E-7 : f32
    %cst_18 = arith.constant 1.000000e+00 : f32
    %21 = vector.broadcast %cst_17 : f32 to vector<8x4xf32>
    %22 = arith.maximumf %21, %19 : vector<8x4xf32>
    %23 = vector.broadcast %cst_18 : f32 to vector<8x4xf32>
    %24 = arith.minimumf %23, %22 : vector<8x4xf32>
    %c2_i32 = arith.constant 2 : i32
    %25 = vector.broadcast %c2_i32 : i32 to vector<8x4xi32>
    %26 = arith.cmpi sge, %20, %25 : vector<8x4xi32>
    %27 = arith.select %26, %24, %19 : vector<8x4xi1>, vector<8x4xf32>
    %c0_19 = arith.constant 0 : index
    %c0_20 = arith.constant 0 : index
    %28 = vector.load %arg8[%c0_19, %c0_20] : memref<8x4xf32, #tpu.memory_space<vmem>>, vector<8x4xf32>
    tpu.vector_store %arg8[%c0_19, %c0_20], %27 {strides = array<i32>} : memref<8x4xf32, #tpu.memory_space<vmem>>, vector<8x4xf32>,
    return
  }
  func.func @transform_0(%arg0: i32) -> (i32, i32) {
    %c0_i32 = arith.constant 0 : i32
    %c0_i32_0 = arith.constant 0 : i32
    return %arg0, %c0_i32 : i32, i32
  }
  func.func @transform_1(%arg0: i32) -> (i32, i32) {
    %c0_i32 = arith.constant 0 : i32
    %c0_i32_0 = arith.constant 0 : i32
    %c0_i32_1 = arith.constant 0 : i32
    return %c0_i32, %c0_i32_0 : i32, i32
  }
  func.func @transform_2(%arg0: i32) -> (i32, i32) {
    %c0_i32 = arith.constant 0 : i32
    %c0_i32_0 = arith.constant 0 : i32
    %c0_i32_1 = arith.constant 0 : i32
    return %c0_i32, %c0_i32_0 : i32, i32
  }
  func.func @transform_3(%arg0: i32) -> (i32, i32) {
    %c0_i32 = arith.constant 0 : i32
    %c0_i32_0 = arith.constant 0 : i32
    %c0_i32_1 = arith.constant 0 : i32
    return %c0_i32, %c0_i32_0 : i32, i32
  }
  func.func @transform_4(%arg0: i32) -> (i32, i32) {
    %c0_i32 = arith.constant 0 : i32
    %c0_i32_0 = arith.constant 0 : i32
    %c0_i32_1 = arith.constant 0 : i32
    return %c0_i32, %c0_i32_0 : i32, i32
  }
  func.func @transform_5(%arg0: i32) -> (i32, i32) {
    %c0_i32 = arith.constant 0 : i32
    %c0_i32_0 = arith.constant 0 : i32
    %c0_i32_1 = arith.constant 0 : i32
    return %c0_i32, %c0_i32_0 : i32, i32
  }
  func.func @transform_6(%arg0: i32) -> (i32, i32) {
    %c0_i32 = arith.constant 0 : i32
    %c0_i32_0 = arith.constant 0 : i32
    %c0_i32_1 = arith.constant 0 : i32
    return %c0_i32, %c0_i32_0 : i32, i32
  }
  func.func @transform_7(%arg0: i32) -> (i32, i32) {
    %c0_i32 = arith.constant 0 : i32
    %c0_i32_0 = arith.constant 0 : i32
    return %arg0, %c0_i32 : i32, i32
  }
}

</mosaic_0001>

<llo_original>
// kernel: actor_network_forward.1
$region0: #{actor_network_forward.1}
  #allocation0 [shape = 'u32[]', space=smem, size = 0x4, offset = 0x4, fixed_abs, tag = 'smem constant byte address 0x4 - core index']
  #allocation1 [shape = 'u32[144,128]{1,0:T(1,128)}', space=vmem, size = 0x12000, scoped, tag = 'internal scratch']
  %s0 = inlined_call_operand.vmem [shape: f32[8,8], index: 0, kind: input, shape index: {}]
  %s1 = inlined_call_operand.vmem [shape: f32[8,128], index: 1, kind: input, shape index: {}]
  %s2 = inlined_call_operand.vmem [shape: f32[1,128], index: 2, kind: input, shape index: {}]
  %s3 = inlined_call_operand.vmem [shape: f32[128,128], index: 3, kind: input, shape index: {}]
  %s4 = inlined_call_operand.vmem [shape: f32[1,128], index: 4, kind: input, shape index: {}]
  %s5 = inlined_call_operand.vmem [shape: f32[128,4], index: 5, kind: input, shape index: {}]
  %s6 = inlined_call_operand.vmem [shape: f32[1,4], index: 6, kind: input, shape index: {}]
  %s7 = inlined_call_operand.vmem [shape: f32[8,4], index: 7, kind: output, shape index: {}]
  %s8 = sld [smem:[#allocation0]]
  $region38: #{actor_network_forward.1} parent=0
    _
  %s10 = ssub.s32 1, %s8
  %s11 = scalar_select 0, %s10, %s8
  // Predicated region
  $region2: #{actor_network_forward.1} parent=0 // pred_check
    _
  $region3: #{actor_network_forward.1} parent=0 // pred_check_branch
    %13 = sbr.rel (0) target = $region5
  $region4: #{actor_network_forward.1} parent=0 // pred_region
    _
  $region5: #{actor_network_forward.1} parent=0 // pred_fallthru
    _
  // Predicated region
  $region6: #{actor_network_forward.1} parent=0 // pred_check
    _
  $region7: #{actor_network_forward.1} parent=0 // pred_check_branch
    %15 = sbr.rel (0) target = $region9
  $region8: #{actor_network_forward.1} parent=0 // pred_region
    _
  $region9: #{actor_network_forward.1} parent=0 // pred_fallthru
    _
  // Predicated region
  $region10: #{actor_network_forward.1} parent=0 // pred_check
    _
  $region11: #{actor_network_forward.1} parent=0 // pred_check_branch
    %17 = sbr.rel (0) target = $region13
  $region12: #{actor_network_forward.1} parent=0 // pred_region
    _
  $region13: #{actor_network_forward.1} parent=0 // pred_fallthru
    _
  // Predicated region
  $region14: #{actor_network_forward.1} parent=0 // pred_check
    _
  $region15: #{actor_network_forward.1} parent=0 // pred_check_branch
    %19 = sbr.rel (0) target = $region17
  $region16: #{actor_network_forward.1} parent=0 // pred_region
    _
  $region17: #{actor_network_forward.1} parent=0 // pred_fallthru
    _
  // Predicated region
  $region18: #{actor_network_forward.1} parent=0 // pred_check
    _
  $region19: #{actor_network_forward.1} parent=0 // pred_check_branch
    %21 = sbr.rel (0) target = $region21
  $region20: #{actor_network_forward.1} parent=0 // pred_region
    _
  $region21: #{actor_network_forward.1} parent=0 // pred_fallthru
    _
  // Predicated region
  $region22: #{actor_network_forward.1} parent=0 // pred_check
    _
  $region23: #{actor_network_forward.1} parent=0 // pred_check_branch
    %23 = sbr.rel (0) target = $region25
  $region24: #{actor_network_forward.1} parent=0 // pred_region
    _
  $region25: #{actor_network_forward.1} parent=0 // pred_fallthru
    _
  // Predicated region
  $region26: #{actor_network_forward.1} parent=0 // pred_check
    _
  $region27: #{actor_network_forward.1} parent=0 // pred_check_branch
    %25 = sbr.rel (0) target = $region29
  $region28: #{actor_network_forward.1} parent=0 // pred_region
    _
  $region29: #{actor_network_forward.1} parent=0 // pred_fallthru
    _
  %v26 = vld [vmem:[%s0] sm:$0xff]
  %v27 = vld [vmem:[%s1] sm:$0xff]
  %v28 = vld [vmem:[%s2] sm:$0x1]
  %v30 = vlaneseq
  %v31 = vshrl.u32 %v30, 7
  %v32 = vsub.s32 0, %v31
  %v33 = vrot.slane %v28, %v32
  %vm35 = vcmask 64512
  %v37 = vsel %vm35, %v26, 0
  %39 = vmatprep.subr.mxu0 0.0
  %40 = vmatpush1.msra.mxu0 0.0
  %41 = vmatprep.subr.mxu0 0.0
  %42 = vmatpush1.msra.mxu0 0.0
  %43 = vmatprep.subr.mxu0 0.0
  %44 = vmatpush1.msra.mxu0 0.0
  %45 = vmatprep.subr.mxu0 0.0
  %46 = vmatpush1.msra.mxu0 0.0
  %47 = vmatprep.subr.mxu0 0.0
  %48 = vmatpush1.msra.mxu0 0.0
  %49 = vmatprep.subr.mxu0 0.0
  %50 = vmatpush1.msra.mxu0 0.0
  %51 = vmatprep.subr.mxu0 0.0
  %52 = vmatpush1.msra.mxu0 0.0
  %53 = vmatprep.subr.mxu0 0.0
  %54 = vmatpush1.msra.mxu0 0.0
  %55 = vmatprep.subr.mxu0 0.0
  %56 = vmatpush1.msra.mxu0 0.0
  %57 = vmatprep.subr.mxu0 0.0
  %58 = vmatpush1.msra.mxu0 0.0
  %59 = vmatprep.subr.mxu0 0.0
  %60 = vmatpush1.msra.mxu0 0.0
  %61 = vmatprep.subr.mxu0 0.0
  %62 = vmatpush1.msra.mxu0 0.0
  %63 = vmatprep.subr.mxu0 0.0
  %64 = vmatpush1.msra.mxu0 0.0
  %65 = vmatprep.subr.mxu0 0.0
  %66 = vmatpush1.msra.mxu0 0.0
  %67 = vmatprep.subr.mxu0 0.0
  %68 = vmatpush1.msra.mxu0 0.0
  %69 = vmatprep.subr.mxu0 0.0
  %70 = vmatpush1.msra.mxu0 %v27
  %71 = vmatprep.subr.mxu0 0.0
  %72 = vmatpush2.msra.mxu0 0.0
  %73 = vmatprep.subr.mxu0 0.0
  %74 = vmatpush2.msra.mxu0 0.0
  %75 = vmatprep.subr.mxu0 0.0
  %76 = vmatpush2.msra.mxu0 0.0
  %77 = vmatprep.subr.mxu0 0.0
  %78 = vmatpush2.msra.mxu0 0.0
  %79 = vmatprep.subr.mxu0 0.0
  %80 = vmatpush2.msra.mxu0 0.0
  %81 = vmatprep.subr.mxu0 0.0
  %82 = vmatpush2.msra.mxu0 0.0
  %83 = vmatprep.subr.mxu0 0.0
  %84 = vmatpush2.msra.mxu0 0.0
  %85 = vmatprep.subr.mxu0 0.0
  %86 = vmatpush2.msra.mxu0 0.0
  %87 = vmatprep.subr.mxu0 0.0
  %88 = vmatpush2.msra.mxu0 0.0
  %89 = vmatprep.subr.mxu0 0.0
  %90 = vmatpush2.msra.mxu0 0.0
  %91 = vmatprep.subr.mxu0 0.0
  %92 = vmatpush2.msra.mxu0 0.0
  %93 = vmatprep.subr.mxu0 0.0
  %94 = vmatpush2.msra.mxu0 0.0
  %95 = vmatprep.subr.mxu0 0.0
  %96 = vmatpush2.msra.mxu0 0.0
  %97 = vmatprep.subr.mxu0 0.0
  %98 = vmatpush2.msra.mxu0 0.0
  %99 = vmatprep.subr.mxu0 0.0
  %100 = vmatpush2.msra.mxu0 0.0
  %101 = vmatprep.subr.mxu0 0.0
  %102 = vmatpush2.msra.mxu0 0.0
  %103 = vmatprep.mubr.f32.mxu0 0.0
  %104 = vmatmul.mubr.f32.gmra.mxu0 %v37
  %v105 = vpop.f32.mrf.mxu0
  %v106 = vadd.f32 %v33, %v105
  %v107 = vpop.f32.mrf.mxu0
  %108 = vdwg.mxu0
  %v109 = vmax.f32 %v106, 0.0
  %v110 = vld [vmem:[%s3] sm:$0xff]
  %v111 = vld [vmem:[%s3 + $0x8] sm:$0xff]
  %v112 = vld [vmem:[%s3 + $0x10] sm:$0xff]
  %v113 = vld [vmem:[%s3 + $0x18] sm:$0xff]
  %v114 = vld [vmem:[%s3 + $0x20] sm:$0xff]
  %v115 = vld [vmem:[%s3 + $0x28] sm:$0xff]
  %v116 = vld [vmem:[%s3 + $0x30] sm:$0xff]
  %v117 = vld [vmem:[%s3 + $0x38] sm:$0xff]
  %v118 = vld [vmem:[%s3 + $0x40] sm:$0xff]
  %v119 = vld [vmem:[%s3 + $0x48] sm:$0xff]
  %v120 = vld [vmem:[%s3 + $0x50] sm:$0xff]
  %v121 = vld [vmem:[%s3 + $0x58] sm:$0xff]
  %v122 = vld [vmem:[%s3 + $0x60] sm:$0xff]
  %v123 = vld [vmem:[%s3 + $0x68] sm:$0xff]
  %v124 = vld [vmem:[%s3 + $0x70] sm:$0xff]
  %v125 = vld [vmem:[%s3 + $0x78] sm:$0xff]
  %v126 = vld [vmem:[%s4] sm:$0x1]
  %v128 = vlaneseq
  %v129 = vshrl.u32 %v128, 7
  %v130 = vsub.s32 0, %v129
  %v131 = vrot.slane %v126, %v130
  %133 = vmatprep.subr.mxu0 0.0
  %134 = vmatpush1.msra.mxu0 %v125
  %135 = vmatprep.subr.mxu0 0.0
  %136 = vmatpush1.msra.mxu0 %v124
  %137 = vmatprep.subr.mxu0 0.0
  %138 = vmatpush1.msra.mxu0 %v123
  %139 = vmatprep.subr.mxu0 0.0
  %140 = vmatpush1.msra.mxu0 %v122
  %141 = vmatprep.subr.mxu0 0.0
  %142 = vmatpush1.msra.mxu0 %v121
  %143 = vmatprep.subr.mxu0 0.0
  %144 = vmatpush1.msra.mxu0 %v120
  %145 = vmatprep.subr.mxu0 0.0
  %146 = vmatpush1.msra.mxu0 %v119
  %147 = vmatprep.subr.mxu0 0.0
  %148 = vmatpush1.msra.mxu0 %v118
  %149 = vmatprep.subr.mxu0 0.0
  %150 = vmatpush1.msra.mxu0 %v117
  %151 = vmatprep.subr.mxu0 0.0
  %152 = vmatpush1.msra.mxu0 %v116
  %153 = vmatprep.subr.mxu0 0.0
  %154 = vmatpush1.msra.mxu0 %v115
  %155 = vmatprep.subr.mxu0 0.0
  %156 = vmatpush1.msra.mxu0 %v114
  %157 = vmatprep.subr.mxu0 0.0
  %158 = vmatpush1.msra.mxu0 %v113
  %159 = vmatprep.subr.mxu0 0.0
  %160 = vmatpush1.msra.mxu0 %v112
  %161 = vmatprep.subr.mxu0 0.0
  %162 = vmatpush1.msra.mxu0 %v111
  %163 = vmatprep.subr.mxu0 0.0
  %164 = vmatpush1.msra.mxu0 %v110
  %165 = vmatprep.subr.mxu0 0.0
  %166 = vmatpush2.msra.mxu0 0.0
  %167 = vmatprep.subr.mxu0 0.0
  %168 = vmatpush2.msra.mxu0 0.0
  %169 = vmatprep.subr.mxu0 0.0
  %170 = vmatpush2.msra.mxu0 0.0
  %171 = vmatprep.subr.mxu0 0.0
  %172 = vmatpush2.msra.mxu0 0.0
  %173 = vmatprep.subr.mxu0 0.0
  %174 = vmatpush2.msra.mxu0 0.0
  %175 = vmatprep.subr.mxu0 0.0
  %176 = vmatpush2.msra.mxu0 0.0
  %177 = vmatprep.subr.mxu0 0.0
  %178 = vmatpush2.msra.mxu0 0.0
  %179 = vmatprep.subr.mxu0 0.0
  %180 = vmatpush2.msra.mxu0 0.0
  %181 = vmatprep.subr.mxu0 0.0
  %182 = vmatpush2.msra.mxu0 0.0
  %183 = vmatprep.subr.mxu0 0.0
  %184 = vmatpush2.msra.mxu0 0.0
  %185 = vmatprep.subr.mxu0 0.0
  %186 = vmatpush2.msra.mxu0 0.0
  %187 = vmatprep.subr.mxu0 0.0
  %188 = vmatpush2.msra.mxu0 0.0
  %189 = vmatprep.subr.mxu0 0.0
  %190 = vmatpush2.msra.mxu0 0.0
  %191 = vmatprep.subr.mxu0 0.0
  %192 = vmatpush2.msra.mxu0 0.0
  %193 = vmatprep.subr.mxu0 0.0
  %194 = vmatpush2.msra.mxu0 0.0
  %195 = vmatprep.subr.mxu0 0.0
  %196 = vmatpush2.msra.mxu0 0.0
  %197 = vmatprep.mubr.f32.mxu0 0.0
  %198 = vmatmul.mubr.f32.gmra.mxu0 %v109
  %v199 = vpop.f32.mrf.mxu0
  %v200 = vadd.f32 %v131, %v199
  %v201 = vpop.f32.mrf.mxu0
  %202 = vdwg.mxu0
  %v203 = vmax.f32 %v200, 0.0
  %v204 = vld [vmem:[%s5] sm:$0xff]
  %v205 = vld [vmem:[%s5 + $0x8] sm:$0xff]
  %v206 = vld [vmem:[%s5 + $0x10] sm:$0xff]
  %v207 = vld [vmem:[%s5 + $0x18] sm:$0xff]
  %v208 = vld [vmem:[%s5 + $0x20] sm:$0xff]
  %v209 = vld [vmem:[%s5 + $0x28] sm:$0xff]
  %v210 = vld [vmem:[%s5 + $0x30] sm:$0xff]
  %v211 = vld [vmem:[%s5 + $0x38] sm:$0xff]
  %v212 = vld [vmem:[%s5 + $0x40] sm:$0xff]
  %v213 = vld [vmem:[%s5 + $0x48] sm:$0xff]
  %v214 = vld [vmem:[%s5 + $0x50] sm:$0xff]
  %v215 = vld [vmem:[%s5 + $0x58] sm:$0xff]
  %v216 = vld [vmem:[%s5 + $0x60] sm:$0xff]
  %v217 = vld [vmem:[%s5 + $0x68] sm:$0xff]
  %v218 = vld [vmem:[%s5 + $0x70] sm:$0xff]
  %v219 = vld [vmem:[%s5 + $0x78] sm:$0xff]
  %v220 = vld [vmem:[%s6] sm:$0x1]
  %v222 = vlaneseq
  %v223 = vshrl.u32 %v222, 7
  %v224 = vsub.s32 0, %v223
  %v225 = vrot.slane %v220, %v224
  %227 = vmatprep.subr.mxu0 0.0
  %228 = vmatpush1.msra.mxu0 %v219
  %229 = vmatprep.subr.mxu0 0.0
  %230 = vmatpush1.msra.mxu0 %v218
  %231 = vmatprep.subr.mxu0 0.0
  %232 = vmatpush1.msra.mxu0 %v217
  %233 = vmatprep.subr.mxu0 0.0
  %234 = vmatpush1.msra.mxu0 %v216
  %235 = vmatprep.subr.mxu0 0.0
  %236 = vmatpush1.msra.mxu0 %v215
  %237 = vmatprep.subr.mxu0 0.0
  %238 = vmatpush1.msra.mxu0 %v214
  %239 = vmatprep.subr.mxu0 0.0
  %240 = vmatpush1.msra.mxu0 %v213
  %241 = vmatprep.subr.mxu0 0.0
  %242 = vmatpush1.msra.mxu0 %v212
  %243 = vmatprep.subr.mxu0 0.0
  %244 = vmatpush1.msra.mxu0 %v211
  %245 = vmatprep.subr.mxu0 0.0
  %246 = vmatpush1.msra.mxu0 %v210
  %247 = vmatprep.subr.mxu0 0.0
  %248 = vmatpush1.msra.mxu0 %v209
  %249 = vmatprep.subr.mxu0 0.0
  %250 = vmatpush1.msra.mxu0 %v208
  %251 = vmatprep.subr.mxu0 0.0
  %252 = vmatpush1.msra.mxu0 %v207
  %253 = vmatprep.subr.mxu0 0.0
  %254 = vmatpush1.msra.mxu0 %v206
  %255 = vmatprep.subr.mxu0 0.0
  %256 = vmatpush1.msra.mxu0 %v205
  %257 = vmatprep.subr.mxu0 0.0
  %258 = vmatpush1.msra.mxu0 %v204
  %259 = vmatprep.subr.mxu0 0.0
  %260 = vmatpush2.msra.mxu0 0.0
  %261 = vmatprep.subr.mxu0 0.0
  %262 = vmatpush2.msra.mxu0 0.0
  %263 = vmatprep.subr.mxu0 0.0
  %264 = vmatpush2.msra.mxu0 0.0
  %265 = vmatprep.subr.mxu0 0.0
  %266 = vmatpush2.msra.mxu0 0.0
  %267 = vmatprep.subr.mxu0 0.0
  %268 = vmatpush2.msra.mxu0 0.0
  %269 = vmatprep.subr.mxu0 0.0
  %270 = vmatpush2.msra.mxu0 0.0
  %271 = vmatprep.subr.mxu0 0.0
  %272 = vmatpush2.msra.mxu0 0.0
  %273 = vmatprep.subr.mxu0 0.0
  %274 = vmatpush2.msra.mxu0 0.0
  %275 = vmatprep.subr.mxu0 0.0
  %276 = vmatpush2.msra.mxu0 0.0
  %277 = vmatprep.subr.mxu0 0.0
  %278 = vmatpush2.msra.mxu0 0.0
  %279 = vmatprep.subr.mxu0 0.0
  %280 = vmatpush2.msra.mxu0 0.0
  %281 = vmatprep.subr.mxu0 0.0
  %282 = vmatpush2.msra.mxu0 0.0
  %283 = vmatprep.subr.mxu0 0.0
  %284 = vmatpush2.msra.mxu0 0.0
  %285 = vmatprep.subr.mxu0 0.0
  %286 = vmatpush2.msra.mxu0 0.0
  %287 = vmatprep.subr.mxu0 0.0
  %288 = vmatpush2.msra.mxu0 0.0
  %289 = vmatprep.subr.mxu0 0.0
  %290 = vmatpush2.msra.mxu0 0.0
  %291 = vmatprep.mubr.f32.mxu0 0.0
  %292 = vmatmul.mubr.f32.gmra.mxu0 %v203
  %v293 = vpop.f32.mrf.mxu0
  %v294 = vadd.f32 %v225, %v293
  %v295 = vpop.f32.mrf.mxu0
  %296 = vdwg.mxu0
  %v297 = vlaneseq
  %v298 = vand.u32 %v297, 127
  %v299 = vmax.f32 %v294, 1e-06
  %v300 = vmin.f32 %v299, 1.0
  %vm301 = vcmp.ge.s32.totalorder %v298, 2
  %v302 = vsel %vm301, %v300, %v294
  %vm303 = vcmask 31744
  %304 = vst.msk [vmem:[%s7] sm:$0xff] %vm303, %v302
  // Predicated region
  $region30: #{actor_network_forward.1} parent=0 // pred_check
    _
  $region31: #{actor_network_forward.1} parent=0 // pred_check_branch
    %306 = sbr.rel (0) target = $region33
  $region32: #{actor_network_forward.1} parent=0 // pred_region
    _
  $region33: #{actor_network_forward.1} parent=0 // pred_fallthru
    _
  // Predicated region
  $region34: #{actor_network_forward.1} parent=0 // pred_check
    _
  $region35: #{actor_network_forward.1} parent=0 // pred_check_branch
    %308 = sbr.rel (0) target = $region37
  $region36: #{actor_network_forward.1} parent=0 // pred_region
    _
  $region37: #{actor_network_forward.1} parent=0 // pred_fallthru
    _

</llo_original>
